<compile_context>
chip_gen: v7x
topology: tpu7x:2x2x1
jax: 0.10.0
libtpu: 0.0.40
codegen_flags: <defaults>
</compile_context>

<pallas_src>
import jax
import jax.numpy as jnp
from jax.experimental import pallas as pl
from jax.experimental.pallas import tpu as pltpu


def _normalize_kernel(std_ref, x_ref, o_ref):
    # std_ref: SMEM (1,) float32   -- the "255.0" normalization parameter
    # x_ref:   VMEM (tr, tl) tile
    # o_ref:   VMEM (tr, tl) tile
    inv_std = 1.0 / std_ref[0]           # scalar unit, once per grid step
    o_ref[...] = x_ref[...] * inv_std    # VPU, lane-dense load/store


def _pick_tile(extent, unit, target):
    """Largest multiple of `unit` that divides `extent` (<= target); else full extent."""
    if extent % unit != 0:
        return extent  # full-extent block is always legal
    best, t, limit = unit, unit, min(extent, target)
    while t <= limit:
        if extent % t == 0:
            best = t
        t += unit
    return best


def normalized_model_forward(x_nchw, std, *, lane_tile_target=2048, row_tile_target=256):
    """x_nchw: (N, C, H, W) float32, std: (1,) float32.  Returns x / std, NCHW."""
    N, C, H, W = x_nchw.shape
    R, L = N * C, H * W

    # NCHW -> (N*C, H*W): contiguous reshape only (no HBM transpose).
    x2 = x_nchw.reshape(R, L)

    tl = _pick_tile(L, 128, lane_tile_target)   # lane axis tile
    tr = _pick_tile(R, 8, row_tile_target)      # sublane axis tile
    grid = (R // tr, L // tl)

    total = N * C * H * W
    cost = pl.CostEstimate(
        flops=total,                      # one multiply per element
        transcendentals=0,
        bytes_accessed=4 * (2 * total + 1),
    )

    out2 = pl.pallas_call(
        _normalize_kernel,
        out_shape=jax.ShapeDtypeStruct((R, L), x_nchw.dtype),
        grid_spec=pltpu.PrefetchScalarGridSpec(
            num_scalar_prefetch=0,
            grid=grid,
            in_specs=[
                pl.BlockSpec(memory_space=pltpu.MemorySpace.SMEM),   # std (1,)
                pl.BlockSpec((tr, tl), lambda i, j: (i, j)),         # x tile
            ],
            out_specs=pl.BlockSpec((tr, tl), lambda i, j: (i, j)),
        ),
        compiler_params=pltpu.CompilerParams(
            dimension_semantics=("parallel", "parallel"),
            vmem_limit_bytes=32 * 1024 * 1024,
        ),
        cost_estimate=cost,
    )(std, x2)

    return out2.reshape(N, C, H, W)


if __name__ == "__main__":
    key = jax.random.PRNGKey(0)

    N, C, H, W = 2, 4, 16, 16
    # Image-like input in the 0..255 range, NCHW like PyTorch.
    x = jax.random.uniform(key, (N, C, H, W), dtype=jnp.float32) * 255.0
    std = jnp.array([255.0], dtype=jnp.float32)   # NormalizedModel.std_value

    out = jax.block_until_ready(normalized_model_forward(x, std))

    # Pure-JAX reference of the same semantics.
    ref = x / std[0]
    assert out.shape == (N, C, H, W)
    assert jnp.allclose(out, ref, atol=1e-5, rtol=1e-5)

    print("KERNEL_OK")
</pallas_src>

<mosaic_0001>
module attributes {stable_mosaic.version = 11 : i64} {
  func.func @_normalize_kernel(%arg0: i32, %arg1: i32, %arg2: memref<1xf32, #tpu.memory_space<smem>>, %arg3: memref<8x256xf32, #tpu.memory_space<vmem>>, %arg4: memref<8x256xf32, #tpu.memory_space<vmem>>) attributes {dimension_semantics = [#tpu.dimension_semantics<parallel>, #tpu.dimension_semantics<parallel>], iteration_bounds = array<i64: 1, 1>, scalar_prefetch = 0 : i64, scratch_operands = 0 : i64, tpu.core_type = #tpu.core_type<tc>, window_params = [{transform_indices = @transform_0, window_bounds = array<i64: 1>}, {transform_indices = @transform_1, window_bounds = array<i64: 8, 256>}, {transform_indices = @transform_2, window_bounds = array<i64: 8, 256>}]} {
    %c0 = arith.constant 0 : index
    %0 = memref.load %arg2[%c0] : memref<1xf32, #tpu.memory_space<smem>>
    %cst = arith.constant 1.000000e+00 : f32
    %1 = arith.divf %cst, %0 : f32
    %c0_0 = arith.constant 0 : index
    %c0_1 = arith.constant 0 : index
    %2 = vector.load %arg3[%c0_0, %c0_1] : memref<8x256xf32, #tpu.memory_space<vmem>>, vector<8x256xf32>
    %3 = vector.broadcast %1 : f32 to vector<8x256xf32>
    %4 = arith.mulf %2, %3 : vector<8x256xf32>
    %c0_2 = arith.constant 0 : index
    %c0_3 = arith.constant 0 : index
    %5 = vector.load %arg4[%c0_2, %c0_3] : memref<8x256xf32, #tpu.memory_space<vmem>>, vector<8x256xf32>
    tpu.vector_store %arg4[%c0_2, %c0_3], %4 {strides = array<i32>} : memref<8x256xf32, #tpu.memory_space<vmem>>, vector<8x256xf32>,
    return
  }
  func.func @transform_0(%arg0: i32, %arg1: i32) -> i32 {
    %c0_i32 = arith.constant 0 : i32
    %c0_i32_0 = arith.constant 0 : i32
    return %c0_i32 : i32
  }
  func.func @transform_1(%arg0: i32, %arg1: i32) -> (i32, i32) {
    %c0_i32 = arith.constant 0 : i32
    return %arg0, %arg1 : i32, i32
  }
  func.func @transform_2(%arg0: i32, %arg1: i32) -> (i32, i32) {
    %c0_i32 = arith.constant 0 : i32
    return %arg0, %arg1 : i32, i32
  }
}

</mosaic_0001>

<llo_original>
// kernel: tpu_custom_call.1
$region0: #{tpu_custom_call.1}
  #allocation0 [shape = 'u32[]', space=smem, size = 0x4, offset = 0x4, fixed_abs, tag = 'smem constant byte address 0x4 - core index']
  #allocation1 [shape = 'u32[144,128]{1,0:T(1,128)}', space=vmem, size = 0x12000, scoped, tag = 'internal scratch']
  #allocation2 [shape = 'f32[1]{0:T(128)S(6)}', space=smem, size = 0x200, scoped, tag = 'scoped memory for tpu_custom_call.1']
  %s0 = inlined_call_operand.<no memory space> [shape: f32[1], index: 0, kind: input, shape index: {}]
  %s1 = inlined_call_operand.hbm [shape: f32[8,256], index: 1, kind: input, shape index: {}]
  %s2 = inlined_call_operand.hbm [shape: f32[8,256], index: 2, kind: output, shape index: {}]
  %s3 = sld [smem:[#allocation0]]
  $region22: #{tpu_custom_call.1} parent=0
    _
  %s5 = ssub.s32 1, %s3
  %s6 = scalar_select 0, %s5, %s3
  %7 = sst [smem:[#allocation2]] %s0
  $region1: #{tpu_custom_call.1} parent=0
    #allocation3 [shape = 'u8[8192]{0}', space=vmem, size = 0x2000, scoped, tag = 'input window, operand 1, single buffered']
    #allocation4 [shape = 's32[1]{0}', space=sflag, size = 0x4, scoped, tag = 'scoped memory for tpu_custom_call.1']
    #allocation5 [shape = 's32[1]{0}', space=sflag, size = 0x4, scoped, tag = 'scoped memory for tpu_custom_call.1']
    #allocation6 [shape = 'u8[8192]{0}', space=vmem, size = 0x2000, scoped, tag = 'output window, operand 0, single buffered']
    %8 = vsyncpa [#allocation4], 0
    %9 = vsyncpa [#allocation5], 0
    // Predicated region
    $region2: #{tpu_custom_call.1} parent=1 // pred_check
      _
    $region3: #{tpu_custom_call.1} parent=1 // pred_check_branch
      %11 = sbr.rel (0) target = $region5
    $region4: #{tpu_custom_call.1} parent=1 // pred_region
      _
    $region5: #{tpu_custom_call.1} parent=1 // pred_fallthru
      _
    // Predicated region
    $region6: #{tpu_custom_call.1} parent=1 // pred_check
      _
    $region7: #{tpu_custom_call.1} parent=1 // pred_check_branch
      %13 = sbr.rel (0) target = $region9
    $region8: #{tpu_custom_call.1} parent=1 // pred_region
      %s15 = ssub.s32 256, 256
      %16 = vsyncadd [#allocation4], %s15
      %s18 = sshll.u32 [#allocation3], 4
      %s19 = int_to_ptr.vmem [resolvable:$true] %s18
      %21 = dma.hbm_to_vmem [thread:$0]  %s1, 256, %s19, [#allocation4]
    $region9: #{tpu_custom_call.1} parent=1 // pred_fallthru
      _
    // Predicated region
    $region10: #{tpu_custom_call.1} parent=1 // pred_check
      _
    $region11: #{tpu_custom_call.1} parent=1 // pred_check_branch
      %23 = sbr.rel (0) target = $region13
    $region12: #{tpu_custom_call.1} parent=1 // pred_region
      %24 = dma.done [#allocation4], 256
    $region13: #{tpu_custom_call.1} parent=1 // pred_fallthru
      _
    %s25 = sld [smem:[#allocation2]]
    %v26 = vstv %s25
    %v27 = vrcp.pop %v26
    %s28 = vtos %v27
    %v29 = vld [vmem:[#allocation3] sm:$0xff]
    %v30 = vld [vmem:[#allocation3 + $0x8] sm:$0xff]
    %v31 = vstv %s28
    %v32 = vmul.f32 %v29, %v31
    %v33 = vmul.f32 %v30, %v31
    %34 = vst [vmem:[#allocation6] sm:$0xff] %v32
    %35 = vst [vmem:[#allocation6 + $0x8] sm:$0xff] %v33
    // Predicated region
    $region14: #{tpu_custom_call.1} parent=1 // pred_check
      _
    $region15: #{tpu_custom_call.1} parent=1 // pred_check_branch
      %37 = sbr.rel (0) target = $region17
    $region16: #{tpu_custom_call.1} parent=1 // pred_region
      %s39 = ssub.s32 256, 256
      %40 = vsyncadd [#allocation5], %s39
      %s42 = sshll.u32 [#allocation6], 4
      %s43 = int_to_ptr.vmem [resolvable:$true] %s42
      %45 = dma.vmem_to_hbm [thread:$0]  %s43, 256, %s2, [#allocation5]
    $region17: #{tpu_custom_call.1} parent=1 // pred_fallthru
      _
    // Predicated region
    $region18: #{tpu_custom_call.1} parent=1 // pred_check
      _
    $region19: #{tpu_custom_call.1} parent=1 // pred_check_branch
      %47 = sbr.rel (0) target = $region21
    $region20: #{tpu_custom_call.1} parent=1 // pred_region
      %48 = dma.done [#allocation5], 256
    $region21: #{tpu_custom_call.1} parent=1 // pred_fallthru
      _
    %49 = vsyncpa [#allocation4], 1
    %50 = vsyncpa [#allocation5], 1

</llo_original>
